<compile_context>
chip_gen: v6e
topology: v6e:2x2x1
jax: 0.10.0
libtpu: 0.0.40
codegen_flags: <defaults>
</compile_context>

<pallas_src>
import functools

import jax
import jax.numpy as jnp
from jax.experimental import pallas as pl
from jax.experimental.pallas import tpu as pltpu

_MIB = 1024 * 1024


# ----------------------------------------------------------------------------
# Kernels
# ----------------------------------------------------------------------------
def _mean_kernel_single(x_ref, o_ref, *, inv_k):
    """Single-pass mean: x_ref (TB, K, TH) -> o_ref (TB, TH). No scratch."""
    # Cross-sublane (axis=1) reduce maps to the XLU; dtype=f32 accumulates in
    # f32 without materializing a full f32 copy of the input block.
    o_ref[...] = (jnp.sum(x_ref[...], axis=1, dtype=jnp.float32) * inv_k
                  ).astype(o_ref.dtype)


def _mean_kernel_ksplit(x_ref, o_ref, acc_ref, *, inv_k, tk, k_total, need_mask):
    """K-split mean with f32 VMEM accumulator across the trailing K grid axis."""
    k = pl.program_id(2)

    @pl.when(k == 0)
    def _init():
        acc_ref[...] = jnp.zeros_like(acc_ref)

    x = x_ref[...]
    if need_mask:
        # tk does not divide K: zero out padded sample rows of the last block.
        ids = k * tk + jax.lax.broadcasted_iota(jnp.int32, x_ref.shape, 1)
        x = jnp.where(ids < k_total, x, jnp.zeros_like(x))

    acc_ref[...] += jnp.sum(x, axis=1, dtype=jnp.float32)

    @pl.when(k == pl.num_programs(2) - 1)
    def _finalize():
        o_ref[...] = (acc_ref[...] * inv_k).astype(o_ref.dtype)


# ----------------------------------------------------------------------------
# Tiling
# ----------------------------------------------------------------------------
def _vmem_budget_and_limit():
    """Generation-aware (block budget, scoped vmem limit, two-core hint)."""
    try:
        vmem_cap = int(pltpu.get_tpu_info().vmem_capacity_bytes)
    except Exception:
        vmem_cap = 64 * _MIB  # conservative (v7x-sized) fallback
    if vmem_cap <= 64 * _MIB:
        # v7x-class: 64 MiB physical VMEM, 2 TensorCores per chip.
        # TODO(synk): no stable TensorCore-count query; 64 MiB VMEM is used as
        #             the v7x (2-TC) proxy for the megacore grid check.
        return 22 * _MIB, 40 * _MIB, True
    # v5e / v6e: 128 MiB physical VMEM, 1 TensorCore.
    return 52 * _MIB, 96 * _MIB, False


def _choose_tiles(B, K, H, itemsize, budget, two_cores):
    """Pick (TB, TK, TH, need_mask) respecting (8,128) rules and `budget`."""
    subl = max(8, 32 // max(itemsize, 1))  # sublane packing: 8 f32 / 16 bf16 / 32 i8

    def block_bytes(tb_, tk_, th_, with_acc):
        b = 2 * tb_ * tk_ * th_ * itemsize   # double-buffered input block
        b += 2 * tb_ * th_ * itemsize        # double-buffered output block
        if with_acc:
            b += tb_ * th_ * 4               # f32 accumulator scratch
        return b

    th = H                 # full hidden dim: contiguous DMA, lane-dense stores
    tk = K                 # keep all samples resident when possible
    need_mask = False

    # --- batch (sublane) tile: as many rows as fit with K fully resident ----
    if B <= subl:
        tb = B             # full-dim block is always legal
    else:
        row_bytes = max(1, 2 * (K * H + H) * itemsize)
        max_rows = budget // row_bytes
        tb = (B // subl) * subl
        if max_rows >= subl:
            tb = min(tb, (max_rows // subl) * subl)
        else:
            tb = subl      # full-K block will not fit -> K gets split below

    # --- 2-TC parts: keep >= 2 parallel tiles so both TensorCores get work --
    if two_cores and B > subl:
        if ((B + tb - 1) // tb) * ((H + th - 1) // th) < 2:
            half = ((tb // 2 + subl - 1) // subl) * subl
            tb = max(subl, min(tb, half))

    # --- split the sample (K) axis only if a full-K block still over budget -
    if block_bytes(tb, K, th, with_acc=False) > budget and K > subl:
        per_sample = max(1, 2 * tb * th * itemsize)
        fixed = 2 * tb * th * itemsize + tb * th * 4
        target = max(subl, (budget - fixed) // per_sample)
        tk = 0
        d = (min(target, K) // subl) * subl
        while d >= subl:                      # prefer an exact divisor (no mask)
            if K % d == 0:
                tk = d
                break
            d -= subl
        if tk == 0:                           # no aligned divisor: mask in-kernel
            tk = max(subl, (min(target, K) // subl) * subl)
            need_mask = (K % tk != 0)

    # --- shrink the hidden (lane) tile only as the very last resort ---------
    while (block_bytes(tb, tk, th, with_acc=(tk < K)) > budget
           and th > 128 and th % 256 == 0):
        th //= 2

    return tb, tk, th, need_mask


# ----------------------------------------------------------------------------
# Public wrapper
# ----------------------------------------------------------------------------
def sample_aggregator(encoded_samples: jnp.ndarray,
                      max_block_bytes: int | None = None) -> jnp.ndarray:
    """Aggregate [B, K, H] -> [B, H] by mean over K with a Pallas TPU kernel.

    `max_block_bytes` is a testing/tuning override for the per-step VMEM block
    budget (normally derived from the TPU generation).
    """
    B, K, H = encoded_samples.shape
    itemsize = jnp.dtype(encoded_samples.dtype).itemsize

    budget, vmem_limit, two_cores = _vmem_budget_and_limit()
    if max_block_bytes is not None:
        budget = max_block_bytes

    tb, tk, th, need_mask = _choose_tiles(B, K, H, itemsize, budget, two_cores)

    nb = pl.cdiv(B, tb)
    nh = pl.cdiv(H, th)
    inv_k = 1.0 / K

    if tk == K:
        # Common case: all samples resident -> single pass, no scratch, no K axis.
        kernel = functools.partial(_mean_kernel_single, inv_k=inv_k)
        grid = (nb, nh)
        in_specs = [pl.BlockSpec((tb, K, th), lambda b, h: (b, 0, h))]
        out_specs = pl.BlockSpec((tb, th), lambda b, h: (b, h))
        scratch_shapes = []
        dim_sem = ("parallel", "parallel")
    else:
        kernel = functools.partial(_mean_kernel_ksplit, inv_k=inv_k, tk=tk,
                                   k_total=K, need_mask=need_mask)
        grid = (nb, nh, pl.cdiv(K, tk))
        in_specs = [pl.BlockSpec((tb, tk, th), lambda b, h, k: (b, k, h))]
        out_specs = pl.BlockSpec((tb, th), lambda b, h, k: (b, h))
        scratch_shapes = [pltpu.VMEM((tb, th), jnp.float32)]
        dim_sem = ("parallel", "parallel", "arbitrary")

    return pl.pallas_call(
        kernel,
        out_shape=jax.ShapeDtypeStruct((B, H), encoded_samples.dtype),
        grid_spec=pltpu.PrefetchScalarGridSpec(
            num_scalar_prefetch=0,
            grid=grid,
            in_specs=in_specs,
            out_specs=out_specs,
            scratch_shapes=scratch_shapes,
        ),
        compiler_params=pltpu.CompilerParams(
            dimension_semantics=dim_sem,
            vmem_limit_bytes=vmem_limit,
        ),
    )(encoded_samples)


# ----------------------------------------------------------------------------
# Demo / self-test
# ----------------------------------------------------------------------------
if __name__ == "__main__":
    key = jax.random.PRNGKey(0)

    # Case 1: small shapes consistent with the module: [batch, K samples, hidden].
    # Single-pass kernel, grid (1, 1), full-dim blocks.
    B, K, H = 2, 8, 32
    x = jax.random.normal(key, (B, K, H), dtype=jnp.float32)
    out = sample_aggregator(x)
    jax.block_until_ready(out)
    ref = jnp.mean(x, axis=1)
    assert out.shape == (B, H)
    assert jnp.allclose(out, ref, atol=1e-5, rtol=1e-5)

    # Case 2: bf16 inputs with f32 accumulation, exercising multi-block batch
    # tiling and a padded boundary block on the batch axis.
    B2, K2, H2 = 20, 8, 640
    x2 = jax.random.normal(jax.random.PRNGKey(0), (B2, K2, H2),
                           dtype=jnp.float32).astype(jnp.bfloat16)
    out2 = sample_aggregator(x2)
    jax.block_until_ready(out2)
    ref2 = jnp.mean(x2.astype(jnp.float32), axis=1).astype(jnp.bfloat16)
    assert out2.shape == (B2, H2)
    assert jnp.allclose(out2.astype(jnp.float32), ref2.astype(jnp.float32),
                        atol=2e-2, rtol=2e-2)

    # Case 3: force the K-split + masked-boundary path via a tiny block-budget
    # override (K=20 has no sublane-aligned divisor -> in-kernel mask).
    B3, K3, H3 = 8, 20, 128
    x3 = jax.random.normal(jax.random.PRNGKey(0), (B3, K3, H3), dtype=jnp.float32)
    out3 = sample_aggregator(x3, max_block_bytes=32 * 1024)
    jax.block_until_ready(out3)
    ref3 = jnp.mean(x3, axis=1)
    assert out3.shape == (B3, H3)
    assert jnp.allclose(out3, ref3, atol=1e-5, rtol=1e-5)

    print("KERNEL_OK")
</pallas_src>

<mosaic_0001>
module attributes {stable_mosaic.version = 11 : i64} {
  func.func @_mean_kernel_single(%arg0: i32, %arg1: i32, %arg2: memref<2x8x32xf32, #tpu.memory_space<vmem>>, %arg3: memref<2x32xf32, #tpu.memory_space<vmem>>) attributes {dimension_semantics = [#tpu.dimension_semantics<parallel>, #tpu.dimension_semantics<parallel>], iteration_bounds = array<i64: 1, 1>, scalar_prefetch = 0 : i64, scratch_operands = 0 : i64, tpu.core_type = #tpu.core_type<tc>, window_params = [{transform_indices = @transform_0, window_bounds = array<i64: 2, 8, 32>}, {transform_indices = @transform_1, window_bounds = array<i64: 2, 32>}]} {
    %c0 = arith.constant 0 : index
    %c0_0 = arith.constant 0 : index
    %c0_1 = arith.constant 0 : index
    %0 = vector.load %arg2[%c0, %c0_0, %c0_1] : memref<2x8x32xf32, #tpu.memory_space<vmem>>, vector<2x8x32xf32>
    %cst = arith.constant dense<0.000000e+00> : vector<2x32xf32>
    %1 = vector.multi_reduction <add>, %0, %cst [1] : vector<2x8x32xf32> to vector<2x32xf32>
    %cst_2 = arith.constant 1.250000e-01 : f32
    %2 = vector.broadcast %cst_2 : f32 to vector<2x32xf32>
    %3 = arith.mulf %1, %2 : vector<2x32xf32>
    %c0_3 = arith.constant 0 : index
    %c0_4 = arith.constant 0 : index
    %4 = vector.load %arg3[%c0_3, %c0_4] : memref<2x32xf32, #tpu.memory_space<vmem>>, vector<2x32xf32>
    tpu.vector_store %arg3[%c0_3, %c0_4], %3 {strides = array<i32>} : memref<2x32xf32, #tpu.memory_space<vmem>>, vector<2x32xf32>,
    return
  }
  func.func @transform_0(%arg0: i32, %arg1: i32) -> (i32, i32, i32) {
    %c0_i32 = arith.constant 0 : i32
    %c0_i32_0 = arith.constant 0 : i32
    return %arg0, %c0_i32, %arg1 : i32, i32, i32
  }
  func.func @transform_1(%arg0: i32, %arg1: i32) -> (i32, i32) {
    %c0_i32 = arith.constant 0 : i32
    return %arg0, %arg1 : i32, i32
  }
}

</mosaic_0001>

<llo_original>
// kernel: tpu_custom_call.1
$region0: #{tpu_custom_call.1}
  #allocation0 [shape = 'u32[]', space=smem, size = 0x4, offset = 0x4, fixed_abs, tag = 'smem constant byte address 0x4 - core index']
  #allocation1 [shape = 'u32[144,128]{1,0:T(1,128)}', space=vmem, size = 0x12000, scoped, tag = 'internal scratch']
  %s0 = inlined_call_operand.hbm [shape: f32[2,8,32], index: 0, kind: input, shape index: {}]
  %s1 = inlined_call_operand.hbm [shape: f32[2,32], index: 1, kind: output, shape index: {}]
  %s2 = sld [smem:[#allocation0]]
  $region18: #{tpu_custom_call.1} parent=0
    _
  %s4 = ssub.s32 1, %s2
  %s5 = scalar_select 0, %s4, %s2
  $region1: #{tpu_custom_call.1} parent=0
    #allocation2 [shape = 'u8[8192]{0}', space=vmem, size = 0x2000, scoped, tag = 'input window, operand 0, single buffered']
    #allocation3 [shape = 's32[1]{0}', space=sflag, size = 0x4, scoped, tag = 'scoped memory for tpu_custom_call.1']
    #allocation4 [shape = 's32[1]{0}', space=sflag, size = 0x4, scoped, tag = 'scoped memory for tpu_custom_call.1']
    #allocation5 [shape = 'u8[1024]{0}', space=vmem, size = 0x400, scoped, tag = 'output window, operand 0, single buffered']
    %6 = vsyncpa [#allocation3], 0
    %7 = vsyncpa [#allocation4], 0
    // Predicated region
    $region2: #{tpu_custom_call.1} parent=1 // pred_check
      _
    $region3: #{tpu_custom_call.1} parent=1 // pred_check_branch
      %9 = sbr.rel (0) target = $region5
    $region4: #{tpu_custom_call.1} parent=1 // pred_region
      %s11 = ssub.s32 256, 256
      %12 = vsyncadd [#allocation3], %s11
      %s13 = sshll.u32 [#allocation2], 4
      %s14 = int_to_ptr.vmem [resolvable:$true] %s13
      %19 = dma.hbm_to_vmem [thread:$0]  %s0, 256, %s14, [#allocation3], 128, 128, 8
    $region5: #{tpu_custom_call.1} parent=1 // pred_fallthru
      _
    // Predicated region
    $region6: #{tpu_custom_call.1} parent=1 // pred_check
      _
    $region7: #{tpu_custom_call.1} parent=1 // pred_check_branch
      %21 = sbr.rel (0) target = $region9
    $region8: #{tpu_custom_call.1} parent=1 // pred_region
      %22 = dma.done [#allocation3], 256
    $region9: #{tpu_custom_call.1} parent=1 // pred_fallthru
      _
    %v23 = vld [vmem:[#allocation2] sm:$0xff]
    %v24 = vld [vmem:[#allocation2 + $0x8] sm:$0xff]
    %vm25 = vcmask 261120
    %v26 = vsel %vm25, %v23, 0.0
    %v27 = vrot.slane %v26, 4
    %v28 = vadd.f32 %v26, %v27
    %v29 = vrot.slane %v28, 2
    %v30 = vadd.f32 %v28, %v29
    %v31 = vrot.slane %v30, 1
    %v32 = vadd.f32 %v30, %v31
    %v33 = vsel %vm25, %v24, 0.0
    %v34 = vrot.slane %v33, 4
    %v35 = vadd.f32 %v33, %v34
    %v36 = vrot.slane %v35, 2
    %v37 = vadd.f32 %v35, %v36
    %v38 = vrot.slane %v37, 1
    %v39 = vadd.f32 %v37, %v38
    %v40 = vmul.f32 %v32, 0.125
    %v41 = vmul.f32 %v39, 0.125
    %vm44 = vcmask 1041409
    %v45 = vsel %vm44, %v41, %v40
    %vm47 = vcmask 254976
    %48 = vst.msk [vmem:[#allocation5] sm:$0x3] %vm47, %v45
    // Predicated region
    $region10: #{tpu_custom_call.1} parent=1 // pred_check
      _
    $region11: #{tpu_custom_call.1} parent=1 // pred_check_branch
      %50 = sbr.rel (0) target = $region13
    $region12: #{tpu_custom_call.1} parent=1 // pred_region
      %s52 = ssub.s32 32, 32
      %53 = vsyncadd [#allocation4], %s52
      %s55 = sshll.u32 [#allocation5], 4
      %s56 = int_to_ptr.vmem [resolvable:$true] %s55
      %58 = dma.vmem_to_hbm [thread:$0]  %s56, 32, %s1, [#allocation4]
    $region13: #{tpu_custom_call.1} parent=1 // pred_fallthru
      _
    // Predicated region
    $region14: #{tpu_custom_call.1} parent=1 // pred_check
      _
    $region15: #{tpu_custom_call.1} parent=1 // pred_check_branch
      %60 = sbr.rel (0) target = $region17
    $region16: #{tpu_custom_call.1} parent=1 // pred_region
      %61 = dma.done [#allocation4], 32
    $region17: #{tpu_custom_call.1} parent=1 // pred_fallthru
      _
    %62 = vsyncpa [#allocation3], 1
    %63 = vsyncpa [#allocation4], 1

</llo_original>
